<compile_context>
chip_gen: v5e
topology: v5e:2x2
jax: 0.10.0
libtpu: 0.0.40
codegen_flags: <defaults>
</compile_context>

<pallas_src>
import jax
import jax.numpy as jnp
import numpy as np
from jax.experimental import pallas as pl
from jax.experimental.pallas import tpu as pltpu


def _fc_kernel(x_ref, w_ref, b_ref, o_ref):
    """One (c_out, TM) lane-dense output tile per grid step.

    x_ref : (C, TM)      channel-major slab of pixels (lane-dense)
    w_ref : (c_out, C)   1x1-conv weight (grid-invariant resident)
    b_ref : (c_out, 1)   bias column (grid-invariant resident)
    o_ref : (c_out, TM)  output slab (lane-dense)
    """
    acc = jnp.dot(w_ref[...], x_ref[...], preferred_element_type=jnp.float32)
    o_ref[...] = (acc + b_ref[...]).astype(o_ref.dtype)


def fc_forward(x, weight, bias, *, tm=256):
    """x: (N, C, H, W); weight: (c_out, C) or (c_out, C, 1, 1); bias: (c_out,)."""
    if weight.ndim == 4:
        weight = weight[:, :, 0, 0]
    N, C, H, W = x.shape
    c_out = weight.shape[0]
    M = N * H * W

    # glue: channels-major, all pixels of all batch elements on the lane axis.
    x_cm = jnp.transpose(x, (1, 0, 2, 3)).reshape(C, M)

    # pick a lane-aligned tile and pad M so every block is full (zeros inert).
    tm = min(tm, max(128, pl.cdiv(M, 128) * 128))
    m_pad = pl.cdiv(M, tm) * tm
    if m_pad != M:
        x_cm = jnp.pad(x_cm, ((0, 0), (0, m_pad - M)))

    b_col = bias.reshape(c_out, 1)

    out_cm = pl.pallas_call(
        _fc_kernel,
        out_shape=jax.ShapeDtypeStruct((c_out, m_pad), x.dtype),
        grid_spec=pltpu.PrefetchScalarGridSpec(
            num_scalar_prefetch=0,
            grid=(m_pad // tm,),
            in_specs=[
                pl.BlockSpec((C, tm), lambda i: (0, i)),       # streamed pixels
                pl.BlockSpec((c_out, C), lambda i: (0, 0)),    # resident weight
                pl.BlockSpec((c_out, 1), lambda i: (0, 0)),    # resident bias
            ],
            out_specs=pl.BlockSpec((c_out, tm), lambda i: (0, i)),
        ),
        compiler_params=pltpu.CompilerParams(
            dimension_semantics=("parallel",)),
    )(x_cm, weight, b_col)

    # glue: back to the PyTorch layout (N, c_out, H, W).
    out = out_cm[:, :M].reshape(c_out, N, H, W).transpose(1, 0, 2, 3)
    return out


def ref_forward(x, weight, bias):
    """Pure-JAX reference matching nn.Conv2d(c_in, c_out, (1,1), bias=True)."""
    if weight.ndim == 4:
        weight = weight[:, :, 0, 0]
    return jnp.einsum('oc,nchw->nohw', weight, x) + bias.reshape(1, -1, 1, 1)


if __name__ == "__main__":
    # Small shapes consistent with the module: batch=2, c_in=4, spatial 16x16, c_out=32.
    N, C, H, W = 2, 4, 16, 16
    c_out = 32

    key = jax.random.PRNGKey(0)
    kx, kwgt, kb = jax.random.split(key, 3)

    x = jax.random.normal(kx, (N, C, H, W), dtype=jnp.float32)
    # "Conv2d(c_in, c_out, (1,1))" parameters (same shapes as the module).
    conv_weight = jax.random.normal(kwgt, (c_out, C, 1, 1), dtype=jnp.float32)
    conv_weight = conv_weight * (1.0 / np.sqrt(C))
    conv_bias = jax.random.normal(kb, (c_out,), dtype=jnp.float32) * 0.1

    out = jax.block_until_ready(fc_forward(x, conv_weight, conv_bias))
    ref = ref_forward(x, conv_weight, conv_bias)

    assert out.shape == (N, c_out, H, W)
    np.testing.assert_allclose(np.asarray(out), np.asarray(ref), rtol=1e-4, atol=1e-4)
    print("KERNEL_OK")
</pallas_src>

<mosaic_0001>
module attributes {stable_mosaic.version = 11 : i64} {
  func.func @_fc_kernel(%arg0: i32, %arg1: memref<4x256xf32, #tpu.memory_space<vmem>>, %arg2: memref<32x4xf32, #tpu.memory_space<vmem>>, %arg3: memref<32x1xf32, #tpu.memory_space<vmem>>, %arg4: memref<32x256xf32, #tpu.memory_space<vmem>>) attributes {dimension_semantics = [#tpu.dimension_semantics<parallel>], iteration_bounds = array<i64: 2>, scalar_prefetch = 0 : i64, scratch_operands = 0 : i64, tpu.core_type = #tpu.core_type<tc>, window_params = [{transform_indices = @transform_0, window_bounds = array<i64: 4, 256>}, {pipeline_mode = #tpu.pipeline_mode<synchronous>, transform_indices = @transform_1, window_bounds = array<i64: 32, 4>}, {pipeline_mode = #tpu.pipeline_mode<synchronous>, transform_indices = @transform_2, window_bounds = array<i64: 32, 1>}, {transform_indices = @transform_3, window_bounds = array<i64: 32, 256>}]} {
    %c0 = arith.constant 0 : index
    %c0_0 = arith.constant 0 : index
    %0 = vector.load %arg2[%c0, %c0_0] : memref<32x4xf32, #tpu.memory_space<vmem>>, vector<32x4xf32>
    %c0_1 = arith.constant 0 : index
    %c0_2 = arith.constant 0 : index
    %1 = vector.load %arg1[%c0_1, %c0_2] : memref<4x256xf32, #tpu.memory_space<vmem>>, vector<4x256xf32>
    %cst = arith.constant dense<0.000000e+00> : vector<32x256xf32>
    %2 = tpu.matmul %0, %1, %cst {dimension_numbers = #tpu.dot_dimension_numbers<[1], [0], [0], [1], [0, 0, 1, 1], [], []>} : vector<32x4xf32>, vector<4x256xf32>, vector<32x256xf32> -> vector<32x256xf32>
    %c0_3 = arith.constant 0 : index
    %c0_4 = arith.constant 0 : index
    %3 = vector.load %arg3[%c0_3, %c0_4] : memref<32x1xf32, #tpu.memory_space<vmem>>, vector<32x1xf32>
    %4 = vector.broadcast %3 : vector<32x1xf32> to vector<32x256xf32>
    %5 = arith.addf %2, %4 : vector<32x256xf32>
    %c0_5 = arith.constant 0 : index
    %c0_6 = arith.constant 0 : index
    %6 = vector.load %arg4[%c0_5, %c0_6] : memref<32x256xf32, #tpu.memory_space<vmem>>, vector<32x256xf32>
    tpu.vector_store %arg4[%c0_5, %c0_6], %5 {strides = array<i32>} : memref<32x256xf32, #tpu.memory_space<vmem>>, vector<32x256xf32>,
    return
  }
  func.func @transform_0(%arg0: i32) -> (i32, i32) {
    %c0_i32 = arith.constant 0 : i32
    %c0_i32_0 = arith.constant 0 : i32
    return %c0_i32, %arg0 : i32, i32
  }
  func.func @transform_1(%arg0: i32) -> (i32, i32) {
    %c0_i32 = arith.constant 0 : i32
    %c0_i32_0 = arith.constant 0 : i32
    %c0_i32_1 = arith.constant 0 : i32
    return %c0_i32, %c0_i32_0 : i32, i32
  }
  func.func @transform_2(%arg0: i32) -> (i32, i32) {
    %c0_i32 = arith.constant 0 : i32
    %c0_i32_0 = arith.constant 0 : i32
    %c0_i32_1 = arith.constant 0 : i32
    return %c0_i32, %c0_i32_0 : i32, i32
  }
  func.func @transform_3(%arg0: i32) -> (i32, i32) {
    %c0_i32 = arith.constant 0 : i32
    %c0_i32_0 = arith.constant 0 : i32
    return %c0_i32, %arg0 : i32, i32
  }
}

</mosaic_0001>

<llo_original>
// kernel: tpu_custom_call.1
$region0: #{tpu_custom_call.1}
  #allocation0 [shape = 'u32[]', space=smem, size = 0x4, offset = 0x4, fixed_abs, tag = 'smem constant byte address 0x4 - core index']
  #allocation1 [shape = 'u32[72,128]{1,0:T(1,128)}', space=vmem, size = 0x9000, scoped, tag = 'internal scratch']
  %s0 = inlined_call_operand.vmem [shape: f32[4,512], index: 0, kind: input, shape index: {}]
  %s1 = inlined_call_operand.vmem [shape: f32[32,4], index: 1, kind: input, shape index: {}]
  %s2 = inlined_call_operand.vmem [shape: f32[32,1], index: 2, kind: input, shape index: {}]
  %s3 = inlined_call_operand.hbm [shape: f32[32,512], index: 3, kind: output, shape index: {}]
  %s4 = sld [smem:[#allocation0]]
  $region45: #{tpu_custom_call.1} parent=0
    _
  %s6 = ssub.s32 1, %s4
  %s7 = scalar_select 0, %s6, %s4
  $region1: #{tpu_custom_call.1} parent=0
    #allocation2 [shape = 'u8[65536]{0}', space=vmem, size = 0x10000, scoped, tag = 'output window, operand 0']
    #allocation3 [shape = 's32[2]{0}', space=sflag, size = 0x8, scoped, tag = 'scoped memory for tpu_custom_call.1']
    %8 = vsyncpa [#allocation3], 0
    %s9 = scalar_lea.sflag [#allocation3], 1
    %10 = vsyncpa %s9, 0
    loop: start=0, step=1, limit=4
    $region2: #{tpu_custom_call.1} parent=1 // loop_pre_header
      _
    $region3: #{tpu_custom_call.1} parent=1 // loop_header
      %s12 = sphi 0, %s16
      %p13 = scmp.ge.s32.totalorder %s12, 4
      %s22 = sphi 0, %s24
      %s25 = sphi 0, %s22
      %s26 = sphi 0, %s25
      %s42 = sphi 0, %s26
      %s46 = sphi 0, %s46
      %s48 = sphi 0, %s46
      %s49 = sphi 0, %s48
      %s63 = sphi 0, %s49
      %s67 = sphi 0, %s67
      %s69 = sphi 0, %s67
      %s70 = sphi 0, %s69
      %s84 = sphi 0, %s70
      %s90 = sphi 0, %s92
      %s93 = sphi 0, %s90
      %s94 = sphi 0, %s93
      %s110 = sphi 0, %s94
    $region4: #{tpu_custom_call.1} parent=1 // loop_header_branch
      %15 = sbr.rel (%p13) target = $region8
    $region5: #{tpu_custom_call.1} parent=1 // loop_body
      %s17 = ssub.s32 %s12, 1
      %s18 = ssub.s32 %s12, 2
      %s19 = sadd.s32 %s12, 1
      %s20 = ssub.s32 %s12, %s19
      %p21 = scmp.eq.s32.totalorder %s20, 0
      %s23 = sadd.s32 %s22, 1
      %s24 = scalar_select %p21, %s22, %s23
      %p27 = pneg %p21
      %p28 = scmp.eq.s32.totalorder %s12, 1
      %p29 = por %p27, %p28
      %p30 = scmp.ne.s32.totalorder %s22, %s25
      %p31 = scmp.eq.s32.totalorder %s12, 0
      %p32 = por %p30, %p31
      %p33 = scmp.ne.s32.totalorder %s22, %s25
      %p34 = scmp.eq.s32.totalorder %s17, 1
      %p35 = por %p33, %p34
      %p36 = scmp.ne.s32.totalorder %s25, %s26
      %p37 = scmp.eq.s32.totalorder %s17, 0
      %p38 = por %p36, %p37
      %p39 = scmp.ne.s32.totalorder %s25, %s26
      %p40 = scmp.eq.s32.totalorder %s18, 1
      %p41 = por %p39, %p40
      %p43 = scmp.ne.s32.totalorder %s26, %s42
      %p44 = scmp.eq.s32.totalorder %s18, 0
      %p45 = por %p43, %p44
      %s47 = sadd.s32 %s46, 1
      %p50 = scmp.eq.s32.totalorder %s12, 1
      %p51 = scmp.ne.s32.totalorder %s46, %s48
      %p52 = scmp.eq.s32.totalorder %s12, 0
      %p53 = por %p51, %p52
      %p54 = scmp.ne.s32.totalorder %s46, %s48
      %p55 = scmp.eq.s32.totalorder %s17, 1
      %p56 = por %p54, %p55
      %p57 = scmp.ne.s32.totalorder %s48, %s49
      %p58 = scmp.eq.s32.totalorder %s17, 0
      %p59 = por %p57, %p58
      %p60 = scmp.ne.s32.totalorder %s48, %s49
      %p61 = scmp.eq.s32.totalorder %s18, 1
      %p62 = por %p60, %p61
      %p64 = scmp.ne.s32.totalorder %s49, %s63
      %p65 = scmp.eq.s32.totalorder %s18, 0
      %p66 = por %p64, %p65
      %s68 = sadd.s32 %s67, 1
      %p71 = scmp.eq.s32.totalorder %s12, 1
      %p72 = scmp.ne.s32.totalorder %s67, %s69
      %p73 = scmp.eq.s32.totalorder %s12, 0
      %p74 = por %p72, %p73
      %p75 = scmp.ne.s32.totalorder %s67, %s69
      %p76 = scmp.eq.s32.totalorder %s17, 1
      %p77 = por %p75, %p76
      %p78 = scmp.ne.s32.totalorder %s69, %s70
      %p79 = scmp.eq.s32.totalorder %s17, 0
      %p80 = por %p78, %p79
      %p81 = scmp.ne.s32.totalorder %s69, %s70
      %p82 = scmp.eq.s32.totalorder %s18, 1
      %p83 = por %p81, %p82
      %p85 = scmp.ne.s32.totalorder %s70, %s84
      %p86 = scmp.eq.s32.totalorder %s18, 0
      %p87 = por %p85, %p86
      %s88 = ssub.s32 %s12, %s19
      %p89 = scmp.eq.s32.totalorder %s88, 0
      %s91 = sadd.s32 %s90, 1
      %s92 = scalar_select %p89, %s90, %s91
      %p95 = pneg %p89
      %p96 = scmp.eq.s32.totalorder %s12, 1
      %p97 = por %p95, %p96
      %p98 = scmp.ne.s32.totalorder %s90, %s93
      %p99 = scmp.eq.s32.totalorder %s12, 0
      %p100 = por %p98, %p99
      %p101 = scmp.ne.s32.totalorder %s90, %s93
      %p102 = scmp.eq.s32.totalorder %s17, 1
      %p103 = por %p101, %p102
      %p104 = scmp.ne.s32.totalorder %s93, %s94
      %p105 = scmp.eq.s32.totalorder %s17, 0
      %p106 = por %p104, %p105
      %p107 = scmp.ne.s32.totalorder %s93, %s94
      %p108 = scmp.eq.s32.totalorder %s18, 1
      %p109 = por %p107, %p108
      %p111 = scmp.ne.s32.totalorder %s94, %s110
      %p112 = scmp.eq.s32.totalorder %s18, 0
      %p113 = por %p111, %p112
      %p114 = scmp.le.s32.totalorder 1, %s12
      %p115 = scmp.lt.s32.totalorder %s12, 3
      %p116 = pnand %p114, %p115
      %p117 = pneg %p116
      // Predicated region
      $region9: #{tpu_custom_call.1} parent=5 // pred_check
        _
      $region10: #{tpu_custom_call.1} parent=5 // pred_check_branch
        %119 = sbr.rel (%p116) target = $region12
      $region11: #{tpu_custom_call.1} parent=5 // pred_region
        %s120 = ssub.s32 %s12, 1
        // Predicated region
        $region13: #{tpu_custom_call.1} parent=11 // pred_check
          %p121 = pneg %p59
        $region14: #{tpu_custom_call.1} parent=11 // pred_check_branch
          %123 = sbr.rel (%p121) target = $region16
        $region15: #{tpu_custom_call.1} parent=11 // pred_region
          _
        $region16: #{tpu_custom_call.1} parent=11 // pred_fallthru
          _
        // Predicated region
        $region17: #{tpu_custom_call.1} parent=11 // pred_check
          %p124 = pneg %p80
        $region18: #{tpu_custom_call.1} parent=11 // pred_check_branch
          %126 = sbr.rel (%p124) target = $region20
        $region19: #{tpu_custom_call.1} parent=11 // pred_region
          _
        $region20: #{tpu_custom_call.1} parent=11 // pred_fallthru
          _
      $region12: #{tpu_custom_call.1} parent=5 // pred_fallthru
        _
      %p127 = scmp.lt.s32.totalorder %s12, 2
      // Predicated region
      $region21: #{tpu_custom_call.1} parent=5 // pred_check
        %p128 = pneg %p127
      $region22: #{tpu_custom_call.1} parent=5 // pred_check_branch
        %130 = sbr.rel (%p128) target = $region24
      $region23: #{tpu_custom_call.1} parent=5 // pred_region
        // Predicated region
        $region25: #{tpu_custom_call.1} parent=23 // pred_check
          %p131 = pneg %p32
        $region26: #{tpu_custom_call.1} parent=23 // pred_check_branch
          %133 = sbr.rel (%p131) target = $region28
        $region27: #{tpu_custom_call.1} parent=23 // pred_region
          %s134 = smul.u32 2, %s12
          %p135 = scmp.lt.s32.totalorder %s134, 3
          %s136 = scalar_select %p135, %s134, 3
          %s137 = smul.addr %s136, 4
          %s138 = scalar_lea.vmem %s0, %s137
          %s139 = smul.u32 2, %s12
        $region28: #{tpu_custom_call.1} parent=23 // pred_fallthru
          _
      $region24: #{tpu_custom_call.1} parent=5 // pred_fallthru
        _
      %p140 = scmp.le.s32.totalorder 1, %s12
      %p141 = scmp.lt.s32.totalorder %s12, 3
      %p142 = pnand %p140, %p141
      %p143 = pneg %p142
      // Predicated region
      $region29: #{tpu_custom_call.1} parent=5 // pred_check
        _
      $region30: #{tpu_custom_call.1} parent=5 // pred_check_branch
        %145 = sbr.rel (%p142) target = $region32
      $region31: #{tpu_custom_call.1} parent=5 // pred_region
        %s146 = ssub.s32 %s12, 1
        %s147 = smul.u32 2, %s17
        %p148 = scmp.lt.s32.totalorder %s147, 3
        %s149 = scalar_select %p148, %s147, 3
        %s150 = smul.addr %s149, 4
        %s151 = scalar_lea.vmem %s0, %s150
        %p152 = pneg %p38
        %p153 = pneg %p35
        %p154 = pneg %p59
        %p155 = pneg %p56
        %p156 = pneg %p80
        %p157 = pneg %p77
        %p158 = pneg %p106
        %p159 = pneg %p103
        %s160 = sand.u32 %s93, 1
        %s161 = scalar_lea.sflag [#allocation3], %s160
        %s162 = sand.u32 %s93, 1
        %s163 = smul.addr %s162, 64
        %s164 = scalar_lea.vmem [#allocation2], %s163
        %s165 = smul.u32 2, %s17
        %p166 = scmp.lt.s32.totalorder %s165, 3
        %s167 = scalar_select %p166, %s165, 3
        %s168 = smul.addr %s167, 4
        %s169 = scalar_lea.vmem %s0, %s168
        %s170 = smul.u32 2, %s17
        %s171 = smul.u32 2, %s17
        %v172 = vld [vmem:[%s1] sm:$0xff]
        %v173 = vld [vmem:[%s1 + $0x8] sm:$0xff]
        %v174 = vld [vmem:[%s1 + $0x10] sm:$0xff]
        %v175 = vld [vmem:[%s1 + $0x18] sm:$0xff]
        %v176 = vld [vmem:[%s169] sm:$0xff]
        %v177 = vld [vmem:[%s2] sm:$0xff]
        %v178 = vld [vmem:[%s2 + $0x8] sm:$0xff]
        %v179 = vld [vmem:[%s2 + $0x10] sm:$0xff]
        %v180 = vld [vmem:[%s2 + $0x18] sm:$0xff]
        %182 = vset.pattern.permute.xlu0 0
        %183 = vperm.xlu0 %182, %v177
        %v184 = vpop.permute.xlu0 %183
        %187 = vset.pattern.permute.xlu0 0
        %188 = vperm.xlu0 %187, %v178
        %v189 = vpop.permute.xlu0 %188
        %192 = vset.pattern.permute.xlu0 0
        %193 = vperm.xlu0 %192, %v179
        %v194 = vpop.permute.xlu0 %193
        %197 = vset.pattern.permute.xlu0 0
        %198 = vperm.xlu0 %197, %v180
        %v199 = vpop.permute.xlu0 %198
        %202 = vst [vmem:[#allocation1] ss:$2 sm:$0xff] %v176
        %v203 = vld.sshfl [vmem:[#allocation1] sm:$0xff pattern:$0x75316420]
        %v204 = vld.sshfl [vmem:[#allocation1 + $0x8] sm:$0xff pattern:$0x75316420]
        %vm205 = vcmask 31744
        %v207 = vsel %vm205, %v172, 0
        %v210 = vsel %vm205, %v173, 0
        %v213 = vsel %vm205, %v174, 0
        %v216 = vsel %vm205, %v175, 0
        %vm218 = vcmask 1043456
        %v219 = vsel %vm218, %v203, 0
        %v221 = vsel %vm218, %v204, 0
        %223 = vmatpush.msra.mxu0 0.0
        %224 = vmatpush.msra.mxu0 0.0
        %225 = vmatpush.msra.mxu0 0.0
        %226 = vmatpush.msra.mxu0 0.0
        %227 = vmatpush.msra.mxu0 0.0
        %228 = vmatpush.msra.mxu0 0.0
        %229 = vmatpush.msra.mxu0 0.0
        %230 = vmatpush.msra.mxu0 0.0
        %231 = vmatpush.msra.mxu0 0.0
        %232 = vmatpush.msra.mxu0 0.0
        %233 = vmatpush.msra.mxu0 0.0
        %234 = vmatpush.msra.mxu0 0.0
        %235 = vmatpush.msra.mxu0 0.0
        %236 = vmatpush.msra.mxu0 0.0
        %237 = vmatpush.msra.mxu0 0.0
        %238 = vmatpush.msra.mxu0 %v219
        %239 = vmatmul.f32.gmra.mxu0 %v207
        %v240 = vpop.f32.mrf.mxu0
        %v241 = vadd.f32 %v184, %v240
        %242 = vmatmul.f32.gmra.mxu0 %v210
        %v243 = vpop.f32.mrf.mxu0
        %v244 = vadd.f32 %v189, %v243
        %245 = vmatmul.f32.gmra.mxu0 %v213
        %v246 = vpop.f32.mrf.mxu0
        %v247 = vadd.f32 %v194, %v246
        %248 = vmatmul.f32.gmra.mxu0 %v216
        %v249 = vpop.f32.mrf.mxu0
        %v250 = vadd.f32 %v199, %v249
        %251 = vdwg.mxu0
        %252 = vmatpush.msra.mxu0 0.0
        %253 = vmatpush.msra.mxu0 0.0
        %254 = vmatpush.msra.mxu0 0.0
        %255 = vmatpush.msra.mxu0 0.0
        %256 = vmatpush.msra.mxu0 0.0
        %257 = vmatpush.msra.mxu0 0.0
        %258 = vmatpush.msra.mxu0 0.0
        %259 = vmatpush.msra.mxu0 0.0
        %260 = vmatpush.msra.mxu0 0.0
        %261 = vmatpush.msra.mxu0 0.0
        %262 = vmatpush.msra.mxu0 0.0
        %263 = vmatpush.msra.mxu0 0.0
        %264 = vmatpush.msra.mxu0 0.0
        %265 = vmatpush.msra.mxu0 0.0
        %266 = vmatpush.msra.mxu0 0.0
        %267 = vmatpush.msra.mxu0 %v221
        %268 = vmatmul.f32.gmra.mxu0 %v207
        %v269 = vpop.f32.mrf.mxu0
        %v270 = vadd.f32 %v184, %v269
        %271 = vmatmul.f32.gmra.mxu0 %v210
        %v272 = vpop.f32.mrf.mxu0
        %v273 = vadd.f32 %v189, %v272
        %274 = vmatmul.f32.gmra.mxu0 %v213
        %v275 = vpop.f32.mrf.mxu0
        %v276 = vadd.f32 %v194, %v275
        %277 = vmatmul.f32.gmra.mxu0 %v216
        %v278 = vpop.f32.mrf.mxu0
        %v279 = vadd.f32 %v199, %v278
        %280 = vdwg.mxu0
        %281 = vst [vmem:[%s164] sm:$0xff] %v241
        %282 = vst [vmem:[%s164 + $0x8] sm:$0xff] %v270
        %283 = vst [vmem:[%s164 + $0x10] sm:$0xff] %v244
        %284 = vst [vmem:[%s164 + $0x18] sm:$0xff] %v273
        %285 = vst [vmem:[%s164 + $0x20] sm:$0xff] %v247
        %286 = vst [vmem:[%s164 + $0x28] sm:$0xff] %v276
        %287 = vst [vmem:[%s164 + $0x30] sm:$0xff] %v250
        %288 = vst [vmem:[%s164 + $0x38] sm:$0xff] %v279
        %s289 = sand.u32 %s93, 1
        %s290 = scalar_lea.sflag [#allocation3], %s289
        %s291 = sand.u32 %s93, 1
        %s292 = smul.addr %s291, 64
        %s293 = scalar_lea.vmem [#allocation2], %s292
        // Predicated region
        $region33: #{tpu_custom_call.1} parent=31 // pred_check
          %p294 = pneg %p103
        $region34: #{tpu_custom_call.1} parent=31 // pred_check_branch
          %296 = sbr.rel (%p294) target = $region36
        $region35: #{tpu_custom_call.1} parent=31 // pred_region
          %s297 = smul.u32 2, %s17
          %299 = vsyncadd %s290, 0
          %s300 = smul.addr %s297, 8
          %s301 = scalar_lea.hbm %s3, %s300
          %s302 = sshll.u32 %s293, 4
          %s303 = int_to_ptr.vmem [resolvable:$true] %s302
          %s304 = sshll.u32 %s301, 4
          %s305 = int_to_ptr.hbm [resolvable:$true] %s304
          %310 = dma.vmem_to_hbm [thread:$0]  %s303, 1024, %s305, %s290, 256, 512, 16
        $region36: #{tpu_custom_call.1} parent=31 // pred_fallthru
          _
      $region32: #{tpu_custom_call.1} parent=5 // pred_fallthru
        _
      %p311 = scmp.le.s32.totalorder 2, %s12
      // Predicated region
      $region37: #{tpu_custom_call.1} parent=5 // pred_check
        %p312 = pneg %p311
      $region38: #{tpu_custom_call.1} parent=5 // pred_check_branch
        %314 = sbr.rel (%p312) target = $region40
      $region39: #{tpu_custom_call.1} parent=5 // pred_region
        %s315 = ssub.s32 %s12, 2
        // Predicated region
        $region41: #{tpu_custom_call.1} parent=39 // pred_check
          %p316 = pneg %p109
        $region42: #{tpu_custom_call.1} parent=39 // pred_check_branch
          %318 = sbr.rel (%p316) target = $region44
        $region43: #{tpu_custom_call.1} parent=39 // pred_region
          %s319 = sand.u32 %s94, 1
          %s320 = scalar_lea.sflag [#allocation3], %s319
          %s321 = sand.u32 %s94, 1
          %s322 = smul.addr %s321, 64
          %s323 = scalar_lea.vmem [#allocation2], %s322
          %325 = dma.done %s320, 1024
        $region44: #{tpu_custom_call.1} parent=39 // pred_fallthru
          _
      $region40: #{tpu_custom_call.1} parent=5 // pred_fallthru
        _
    $region6: #{tpu_custom_call.1} parent=1 // loop_footer
      %s16 = sadd.s32 1, %s12
    $region7: #{tpu_custom_call.1} parent=1 // loop_footer_branch
      %11 = sbr.rel target = $region3
    $region8: #{tpu_custom_call.1} parent=1 // loop_exit
      _
    %326 = vsyncpa [#allocation3], 1
    %s327 = scalar_lea.sflag [#allocation3], 1
    %328 = vsyncpa %s327, 1

</llo_original>
